<compile_context>
chip_gen: v7x
topology: tpu7x:2x2x1
jax: 0.10.0
libtpu: 0.0.40
codegen_flags: <defaults>
</compile_context>

<pallas_src>
import functools

import jax
import jax.numpy as jnp
from jax import lax
from jax.experimental import pallas as pl
from jax.experimental.pallas import tpu as pltpu

IN_CH = 4
OUT_CH = 8
BN_EPS = 1e-5


# ---------------------------------------------------------------- kernel ----

def _double_conv_kernel(x_ref, masks_ref, w1_ref, w2_ref, b1_ref, b2_ref,
                        o_ref, col1_ref, col2_ref, *, shifts, ipb, lanes):
    """Fused (3x3 conv [BN folded] + ReLU) x 2 on pooled, lane-dense images.

    x_ref    : (ipb, Cin, LP)   pooled activations, one image's pixels per lane axis
    masks_ref: (9, 1, LP)       0/1 validity masks for the 9 conv offsets
    w1_ref   : (Cout, 9*Cin)    conv1 weights (BN scale folded), im2col-stacked
    w2_ref   : (Cout, 9*Cout)   conv2 weights (BN scale folded)
    b*_ref   : (Cout, 1)        folded BN bias
    o_ref    : (ipb, Cout, LP)  lane-dense output block
    col*_ref : VMEM scratch holding the stacked im2col matrices
    """
    cin = x_ref.shape[1]
    cout = o_ref.shape[1]

    def im2col(act, rows, col_ref):
        # In-VMEM im2col: 9 lane rolls (XLU) + boundary masks, written as
        # stacked rows so each conv layer is a single MXU matmul.
        for t, s in enumerate(shifts):
            src = act if s == 0 else pltpu.roll(act, shift=(-s) % lanes, axis=1)
            if t != 4:                          # centre mask is all-ones: skip
                src = src * masks_ref[t]
            col_ref[t * rows:(t + 1) * rows, :] = src

    for n in range(ipb):                        # static unroll over images
        act = x_ref[n]                                          # (Cin, LP)

        im2col(act, cin, col1_ref)
        h = jnp.dot(w1_ref[...], col1_ref[...],
                    preferred_element_type=jnp.float32)         # (Cout, LP)
        h = jnp.maximum(h + b1_ref[...], 0.0)                   # BN+ReLU folded

        im2col(h, cout, col2_ref)
        y = jnp.dot(w2_ref[...], col2_ref[...],
                    preferred_element_type=jnp.float32)
        y = jnp.maximum(y + b2_ref[...], 0.0)

        # Dropout is identity in eval mode.
        o_ref[n] = y.astype(o_ref.dtype)


# --------------------------------------------------------------- wrapper ----

def _fold_bn_into_conv(w, b, gamma, beta, mean, var, eps=BN_EPS):
    # BN(conv(x, w) + b)  ==  conv(x, scale*w) + (beta + scale*(b - mean))
    scale = gamma / jnp.sqrt(var + eps)
    w_f = w * scale[:, None, None, None]
    b_f = beta + scale * (b - mean)
    return w_f, b_f


def down_forward(x_nchw, p):
    """_Down forward.  x: (N, in_ch, H, W) -> (N, out_ch, H//2, W//2)."""
    N, Cin, H, W = x_nchw.shape
    H2, W2 = (H // 2) * 2, (W // 2) * 2          # MaxPool2d(2,2) floors odd dims
    x = x_nchw[:, :, :H2, :W2]
    Hh, Wh = H2 // 2, W2 // 2
    IMG = Hh * Wh

    # ---- 2x2 max-pool: one fused XLA reduction (4x smaller than x), then a
    # *free* reshape to lane-dense (N, Cin, IMG).  No transposes anywhere.
    pooled = x.reshape(N, Cin, Hh, 2, Wh, 2).max(axis=(3, 5)).reshape(N, Cin, IMG)

    # ---- pad the pixel (lane) axis to a multiple of 128 so rolls and stores
    # are lane-dense.  No-op for typical UNet feature maps (IMG % 128 == 0).
    LP = max(128, ((IMG + 127) // 128) * 128)
    if LP != IMG:
        pooled = jnp.pad(pooled, ((0, 0), (0, 0), (0, LP - IMG)))

    # ---- weights: fold BN scale in, stack into im2col (Cout, 9*C) form ----
    Cout = p["w1"].shape[0]
    w1f, b1 = _fold_bn_into_conv(p["w1"], p["b1"], p["g1"], p["beta1"], p["m1"], p["v1"])
    w2f, b2 = _fold_bn_into_conv(p["w2"], p["b2"], p["g2"], p["beta2"], p["m2"], p["v2"])
    # column index = (kh*3 + kw)*C + ci  (matches the scratch row ordering)
    w1s = jnp.transpose(w1f, (0, 2, 3, 1)).reshape(Cout, 9 * Cin)
    w2s = jnp.transpose(w2f, (0, 2, 3, 1)).reshape(Cout, 9 * Cout)
    b1 = b1.reshape(Cout, 1)
    b2 = b2.reshape(Cout, 1)

    # ---- 0/1 boundary masks for the 9 conv offsets (per image; pad lanes 0) -
    pix = jnp.arange(LP, dtype=jnp.int32)
    yy, xx = pix // Wh, pix % Wh
    offs = [(dy, dx) for dy in (-1, 0, 1) for dx in (-1, 0, 1)]
    masks = jnp.stack([
        ((pix < IMG) & (yy + dy >= 0) & (yy + dy < Hh)
         & (xx + dx >= 0) & (xx + dx < Wh))
        for dy, dx in offs
    ]).astype(jnp.float32).reshape(9, 1, LP)
    shifts = tuple(dy * Wh + dx for dy, dx in offs)

    # ---- block sizing: whole images per block (rolls never need halos).
    # ipb amortizes the ~0.35us per-grid-step overhead for small images while
    # keeping >= 2 grid steps so both v7x TensorCores get work.
    target_pix = 1024
    ipb = max(1, target_pix // LP)
    if N >= 2:
        ipb = min(ipb, N // 2)
    ipb = max(1, min(ipb, N))
    while N % ipb:                               # keep the grid exact
        ipb -= 1
    grid = (N // ipb,)

    kern = functools.partial(_double_conv_kernel, shifts=shifts, ipb=ipb, lanes=LP)
    flops = 2 * N * IMG * Cout * 9 * (Cin + Cout)
    bytes_accessed = 4 * (pooled.size + masks.size + w1s.size + w2s.size
                          + 2 * Cout + N * Cout * LP)

    out = pl.pallas_call(
        kern,
        out_shape=jax.ShapeDtypeStruct((N, Cout, LP), jnp.float32),
        grid=grid,
        in_specs=[
            pl.BlockSpec((ipb, Cin, LP), lambda i: (i, 0, 0)),
            pl.BlockSpec((9, 1, LP), lambda i: (0, 0, 0)),
            pl.BlockSpec((Cout, 9 * Cin), lambda i: (0, 0)),
            pl.BlockSpec((Cout, 9 * Cout), lambda i: (0, 0)),
            pl.BlockSpec((Cout, 1), lambda i: (0, 0)),
            pl.BlockSpec((Cout, 1), lambda i: (0, 0)),
        ],
        out_specs=pl.BlockSpec((ipb, Cout, LP), lambda i: (i, 0, 0)),
        scratch_shapes=[
            pltpu.VMEM((9 * Cin, LP), jnp.float32),    # conv1 im2col
            pltpu.VMEM((9 * Cout, LP), jnp.float32),   # conv2 im2col
        ],
        compiler_params=pltpu.CompilerParams(
            dimension_semantics=("parallel",)),
        cost_estimate=pl.CostEstimate(flops=flops, transcendentals=0,
                                      bytes_accessed=bytes_accessed),
    )(pooled, masks, w1s, w2s, b1, b2)

    # Drop lane padding (identity when LP == IMG) and a free reshape to NCHW.
    return out[:, :, :IMG].reshape(N, Cout, Hh, Wh)


# -------------------------------------------------------------- reference ---

def reference_forward(x_nchw, p):
    x = jnp.transpose(x_nchw, (0, 2, 3, 1))
    pooled = lax.reduce_window(x, -jnp.inf, lax.max,
                               (1, 2, 2, 1), (1, 2, 2, 1), "VALID")

    def conv_bn_relu(h, w, b, g, beta, m, v):
        y = lax.conv_general_dilated(
            h, jnp.transpose(w, (2, 3, 1, 0)), (1, 1), "SAME",
            dimension_numbers=("NHWC", "HWIO", "NHWC")) + b
        y = g * (y - m) / jnp.sqrt(v + BN_EPS) + beta
        return jnp.maximum(y, 0.0)

    h = conv_bn_relu(pooled, p["w1"], p["b1"], p["g1"], p["beta1"], p["m1"], p["v1"])
    h = conv_bn_relu(h, p["w2"], p["b2"], p["g2"], p["beta2"], p["m2"], p["v2"])
    return jnp.transpose(h, (0, 3, 1, 2))


# ------------------------------------------------------------------ setup ---

def init_params(key, in_ch, out_ch):
    ks = jax.random.split(key, 8)
    return {
        # Conv2d weights in PyTorch OIHW layout.
        "w1": 0.1 * jax.random.normal(ks[0], (out_ch, in_ch, 3, 3), jnp.float32),
        "b1": 0.05 * jax.random.normal(ks[1], (out_ch,), jnp.float32),
        "w2": 0.1 * jax.random.normal(ks[2], (out_ch, out_ch, 3, 3), jnp.float32),
        "b2": 0.05 * jax.random.normal(ks[3], (out_ch,), jnp.float32),
        # BatchNorm2d params (randomized affine, default running stats).
        "g1": 1.0 + 0.1 * jax.random.normal(ks[4], (out_ch,), jnp.float32),
        "beta1": 0.05 * jax.random.normal(ks[5], (out_ch,), jnp.float32),
        "m1": jnp.zeros((out_ch,), jnp.float32),
        "v1": jnp.ones((out_ch,), jnp.float32),
        "g2": 1.0 + 0.1 * jax.random.normal(ks[6], (out_ch,), jnp.float32),
        "beta2": 0.05 * jax.random.normal(ks[7], (out_ch,), jnp.float32),
        "m2": jnp.zeros((out_ch,), jnp.float32),
        "v2": jnp.ones((out_ch,), jnp.float32),
    }


if __name__ == "__main__":
    key = jax.random.PRNGKey(0)
    kx, kp = jax.random.split(key)
    x = jax.random.normal(kx, (2, IN_CH, 16, 16), jnp.float32)
    params = init_params(kp, IN_CH, OUT_CH)

    out = jax.jit(down_forward)(x, params)
    out = jax.block_until_ready(out)

    assert out.shape == (2, OUT_CH, 8, 8), out.shape
    ref = reference_forward(x, params)
    err = float(jnp.max(jnp.abs(out - ref)))
    assert jnp.allclose(out, ref, atol=2e-4, rtol=2e-4), err

    print("KERNEL_OK")
</pallas_src>

<mosaic_0001>
module attributes {stable_mosaic.version = 11 : i64} {
  func.func @_double_conv_kernel(%arg0: i32, %arg1: memref<1x4x128xf32, #tpu.memory_space<vmem>>, %arg2: memref<9x1x128xf32, #tpu.memory_space<vmem>>, %arg3: memref<8x36xf32, #tpu.memory_space<vmem>>, %arg4: memref<8x72xf32, #tpu.memory_space<vmem>>, %arg5: memref<8x1xf32, #tpu.memory_space<vmem>>, %arg6: memref<8x1xf32, #tpu.memory_space<vmem>>, %arg7: memref<1x8x128xf32, #tpu.memory_space<vmem>>, %arg8: memref<36x128xf32, #tpu.memory_space<vmem>>, %arg9: memref<72x128xf32, #tpu.memory_space<vmem>>) attributes {dimension_semantics = [#tpu.dimension_semantics<parallel>], iteration_bounds = array<i64: 2>, scalar_prefetch = 0 : i64, scratch_operands = 2 : i64, tpu.core_type = #tpu.core_type<tc>, window_params = [{transform_indices = @transform_0, window_bounds = array<i64: 1, 4, 128>}, {pipeline_mode = #tpu.pipeline_mode<synchronous>, transform_indices = @transform_1, window_bounds = array<i64: 9, 1, 128>}, {pipeline_mode = #tpu.pipeline_mode<synchronous>, transform_indices = @transform_2, window_bounds = array<i64: 8, 36>}, {pipeline_mode = #tpu.pipeline_mode<synchronous>, transform_indices = @transform_3, window_bounds = array<i64: 8, 72>}, {pipeline_mode = #tpu.pipeline_mode<synchronous>, transform_indices = @transform_4, window_bounds = array<i64: 8, 1>}, {pipeline_mode = #tpu.pipeline_mode<synchronous>, transform_indices = @transform_5, window_bounds = array<i64: 8, 1>}, {transform_indices = @transform_6, window_bounds = array<i64: 1, 8, 128>}]} {
    %c0 = arith.constant 0 : index
    %c0_0 = arith.constant 0 : index
    %c0_1 = arith.constant 0 : index
    %0 = vector.load %arg1[%c0, %c0_0, %c0_1] : memref<1x4x128xf32, #tpu.memory_space<vmem>>, vector<1x4x128xf32>
    %1 = vector.shape_cast %0 : vector<1x4x128xf32> to vector<4x128xf32>
    %c9_i32 = arith.constant 9 : i32
    %2 = tpu.dynamic_rotate %1 by %c9_i32 dim 1 : vector<4x128xf32>, i32 -> vector<4x128xf32>
    %c0_2 = arith.constant 0 : index
    %c0_3 = arith.constant 0 : index
    %c0_4 = arith.constant 0 : index
    %3 = vector.load %arg2[%c0_2, %c0_3, %c0_4] : memref<9x1x128xf32, #tpu.memory_space<vmem>>, vector<1x1x128xf32>
    %4 = vector.shape_cast %3 : vector<1x1x128xf32> to vector<1x128xf32>
    %5 = vector.broadcast %4 : vector<1x128xf32> to vector<4x128xf32>
    %6 = arith.mulf %2, %5 : vector<4x128xf32>
    %c0_5 = arith.constant 0 : index
    %c0_6 = arith.constant 0 : index
    %7 = vector.load %arg8[%c0_5, %c0_6] : memref<36x128xf32, #tpu.memory_space<vmem>>, vector<4x128xf32>
    tpu.vector_store %arg8[%c0_5, %c0_6], %6 {strides = array<i32>} : memref<36x128xf32, #tpu.memory_space<vmem>>, vector<4x128xf32>,
    %c8_i32 = arith.constant 8 : i32
    %8 = tpu.dynamic_rotate %1 by %c8_i32 dim 1 : vector<4x128xf32>, i32 -> vector<4x128xf32>
    %c1 = arith.constant 1 : index
    %c0_7 = arith.constant 0 : index
    %c0_8 = arith.constant 0 : index
    %9 = vector.load %arg2[%c1, %c0_7, %c0_8] : memref<9x1x128xf32, #tpu.memory_space<vmem>>, vector<1x1x128xf32>
    %10 = vector.shape_cast %9 : vector<1x1x128xf32> to vector<1x128xf32>
    %11 = vector.broadcast %10 : vector<1x128xf32> to vector<4x128xf32>
    %12 = arith.mulf %8, %11 : vector<4x128xf32>
    %c4 = arith.constant 4 : index
    %c0_9 = arith.constant 0 : index
    %13 = vector.load %arg8[%c4, %c0_9] : memref<36x128xf32, #tpu.memory_space<vmem>>, vector<4x128xf32>
    tpu.vector_store %arg8[%c4, %c0_9], %12 {strides = array<i32>} : memref<36x128xf32, #tpu.memory_space<vmem>>, vector<4x128xf32>,
    %c7_i32 = arith.constant 7 : i32
    %14 = tpu.dynamic_rotate %1 by %c7_i32 dim 1 : vector<4x128xf32>, i32 -> vector<4x128xf32>
    %c2 = arith.constant 2 : index
    %c0_10 = arith.constant 0 : index
    %c0_11 = arith.constant 0 : index
    %15 = vector.load %arg2[%c2, %c0_10, %c0_11] : memref<9x1x128xf32, #tpu.memory_space<vmem>>, vector<1x1x128xf32>
    %16 = vector.shape_cast %15 : vector<1x1x128xf32> to vector<1x128xf32>
    %17 = vector.broadcast %16 : vector<1x128xf32> to vector<4x128xf32>
    %18 = arith.mulf %14, %17 : vector<4x128xf32>
    %c8 = arith.constant 8 : index
    %c0_12 = arith.constant 0 : index
    %19 = vector.load %arg8[%c8, %c0_12] : memref<36x128xf32, #tpu.memory_space<vmem>>, vector<4x128xf32>
    tpu.vector_store %arg8[%c8, %c0_12], %18 {strides = array<i32>} : memref<36x128xf32, #tpu.memory_space<vmem>>, vector<4x128xf32>,
    %c1_i32 = arith.constant 1 : i32
    %20 = tpu.dynamic_rotate %1 by %c1_i32 dim 1 : vector<4x128xf32>, i32 -> vector<4x128xf32>
    %c3 = arith.constant 3 : index
    %c0_13 = arith.constant 0 : index
    %c0_14 = arith.constant 0 : index
    %21 = vector.load %arg2[%c3, %c0_13, %c0_14] : memref<9x1x128xf32, #tpu.memory_space<vmem>>, vector<1x1x128xf32>
    %22 = vector.shape_cast %21 : vector<1x1x128xf32> to vector<1x128xf32>
    %23 = vector.broadcast %22 : vector<1x128xf32> to vector<4x128xf32>
    %24 = arith.mulf %20, %23 : vector<4x128xf32>
    %c12 = arith.constant 12 : index
    %c0_15 = arith.constant 0 : index
    %25 = vector.load %arg8[%c12, %c0_15] : memref<36x128xf32, #tpu.memory_space<vmem>>, vector<4x128xf32>
    tpu.vector_store %arg8[%c12, %c0_15], %24 {strides = array<i32>} : memref<36x128xf32, #tpu.memory_space<vmem>>, vector<4x128xf32>,
    %c16 = arith.constant 16 : index
    %c0_16 = arith.constant 0 : index
    %26 = vector.load %arg8[%c16, %c0_16] : memref<36x128xf32, #tpu.memory_space<vmem>>, vector<4x128xf32>
    tpu.vector_store %arg8[%c16, %c0_16], %1 {strides = array<i32>} : memref<36x128xf32, #tpu.memory_space<vmem>>, vector<4x128xf32>,
    %c127_i32 = arith.constant 127 : i32
    %27 = tpu.dynamic_rotate %1 by %c127_i32 dim 1 : vector<4x128xf32>, i32 -> vector<4x128xf32>
    %c5 = arith.constant 5 : index
    %c0_17 = arith.constant 0 : index
    %c0_18 = arith.constant 0 : index
    %28 = vector.load %arg2[%c5, %c0_17, %c0_18] : memref<9x1x128xf32, #tpu.memory_space<vmem>>, vector<1x1x128xf32>
    %29 = vector.shape_cast %28 : vector<1x1x128xf32> to vector<1x128xf32>
    %30 = vector.broadcast %29 : vector<1x128xf32> to vector<4x128xf32>
    %31 = arith.mulf %27, %30 : vector<4x128xf32>
    %c20 = arith.constant 20 : index
    %c0_19 = arith.constant 0 : index
    %32 = vector.load %arg8[%c20, %c0_19] : memref<36x128xf32, #tpu.memory_space<vmem>>, vector<4x128xf32>
    tpu.vector_store %arg8[%c20, %c0_19], %31 {strides = array<i32>} : memref<36x128xf32, #tpu.memory_space<vmem>>, vector<4x128xf32>,
    %c121_i32 = arith.constant 121 : i32
    %33 = tpu.dynamic_rotate %1 by %c121_i32 dim 1 : vector<4x128xf32>, i32 -> vector<4x128xf32>
    %c6 = arith.constant 6 : index
    %c0_20 = arith.constant 0 : index
    %c0_21 = arith.constant 0 : index
    %34 = vector.load %arg2[%c6, %c0_20, %c0_21] : memref<9x1x128xf32, #tpu.memory_space<vmem>>, vector<1x1x128xf32>
    %35 = vector.shape_cast %34 : vector<1x1x128xf32> to vector<1x128xf32>
    %36 = vector.broadcast %35 : vector<1x128xf32> to vector<4x128xf32>
    %37 = arith.mulf %33, %36 : vector<4x128xf32>
    %c24 = arith.constant 24 : index
    %c0_22 = arith.constant 0 : index
    %38 = vector.load %arg8[%c24, %c0_22] : memref<36x128xf32, #tpu.memory_space<vmem>>, vector<4x128xf32>
    tpu.vector_store %arg8[%c24, %c0_22], %37 {strides = array<i32>} : memref<36x128xf32, #tpu.memory_space<vmem>>, vector<4x128xf32>,
    %c120_i32 = arith.constant 120 : i32
    %39 = tpu.dynamic_rotate %1 by %c120_i32 dim 1 : vector<4x128xf32>, i32 -> vector<4x128xf32>
    %c7 = arith.constant 7 : index
    %c0_23 = arith.constant 0 : index
    %c0_24 = arith.constant 0 : index
    %40 = vector.load %arg2[%c7, %c0_23, %c0_24] : memref<9x1x128xf32, #tpu.memory_space<vmem>>, vector<1x1x128xf32>
    %41 = vector.shape_cast %40 : vector<1x1x128xf32> to vector<1x128xf32>
    %42 = vector.broadcast %41 : vector<1x128xf32> to vector<4x128xf32>
    %43 = arith.mulf %39, %42 : vector<4x128xf32>
    %c28 = arith.constant 28 : index
    %c0_25 = arith.constant 0 : index
    %44 = vector.load %arg8[%c28, %c0_25] : memref<36x128xf32, #tpu.memory_space<vmem>>, vector<4x128xf32>
    tpu.vector_store %arg8[%c28, %c0_25], %43 {strides = array<i32>} : memref<36x128xf32, #tpu.memory_space<vmem>>, vector<4x128xf32>,
    %c119_i32 = arith.constant 119 : i32
    %45 = tpu.dynamic_rotate %1 by %c119_i32 dim 1 : vector<4x128xf32>, i32 -> vector<4x128xf32>
    %c8_26 = arith.constant 8 : index
    %c0_27 = arith.constant 0 : index
    %c0_28 = arith.constant 0 : index
    %46 = vector.load %arg2[%c8_26, %c0_27, %c0_28] : memref<9x1x128xf32, #tpu.memory_space<vmem>>, vector<1x1x128xf32>
    %47 = vector.shape_cast %46 : vector<1x1x128xf32> to vector<1x128xf32>
    %48 = vector.broadcast %47 : vector<1x128xf32> to vector<4x128xf32>
    %49 = arith.mulf %45, %48 : vector<4x128xf32>
    %c32 = arith.constant 32 : index
    %c0_29 = arith.constant 0 : index
    %50 = vector.load %arg8[%c32, %c0_29] : memref<36x128xf32, #tpu.memory_space<vmem>>, vector<4x128xf32>
    tpu.vector_store %arg8[%c32, %c0_29], %49 {strides = array<i32>} : memref<36x128xf32, #tpu.memory_space<vmem>>, vector<4x128xf32>,
    %c0_30 = arith.constant 0 : index
    %c0_31 = arith.constant 0 : index
    %51 = vector.load %arg3[%c0_30, %c0_31] : memref<8x36xf32, #tpu.memory_space<vmem>>, vector<8x36xf32>
    %c0_32 = arith.constant 0 : index
    %c0_33 = arith.constant 0 : index
    %52 = vector.load %arg8[%c0_32, %c0_33] : memref<36x128xf32, #tpu.memory_space<vmem>>, vector<36x128xf32>
    %cst = arith.constant dense<0.000000e+00> : vector<8x128xf32>
    %53 = tpu.matmul %51, %52, %cst {dimension_numbers = #tpu.dot_dimension_numbers<[1], [0], [0], [1], [0, 0, 1, 1], [], []>} : vector<8x36xf32>, vector<36x128xf32>, vector<8x128xf32> -> vector<8x128xf32>
    %c0_34 = arith.constant 0 : index
    %c0_35 = arith.constant 0 : index
    %54 = vector.load %arg5[%c0_34, %c0_35] : memref<8x1xf32, #tpu.memory_space<vmem>>, vector<8x1xf32>
    %55 = vector.broadcast %54 : vector<8x1xf32> to vector<8x128xf32>
    %56 = arith.addf %53, %55 : vector<8x128xf32>
    %cst_36 = arith.constant 0.000000e+00 : f32
    %57 = vector.broadcast %cst_36 : f32 to vector<8x128xf32>
    %58 = arith.maximumf %56, %57 : vector<8x128xf32>
    %c9_i32_37 = arith.constant 9 : i32
    %59 = tpu.dynamic_rotate %58 by %c9_i32_37 dim 1 : vector<8x128xf32>, i32 -> vector<8x128xf32>
    %c0_38 = arith.constant 0 : index
    %c0_39 = arith.constant 0 : index
    %c0_40 = arith.constant 0 : index
    %60 = vector.load %arg2[%c0_38, %c0_39, %c0_40] : memref<9x1x128xf32, #tpu.memory_space<vmem>>, vector<1x1x128xf32>
    %61 = vector.shape_cast %60 : vector<1x1x128xf32> to vector<1x128xf32>
    %62 = vector.broadcast %61 : vector<1x128xf32> to vector<8x128xf32>
    %63 = arith.mulf %59, %62 : vector<8x128xf32>
    %c0_41 = arith.constant 0 : index
    %c0_42 = arith.constant 0 : index
    %64 = vector.load %arg9[%c0_41, %c0_42] : memref<72x128xf32, #tpu.memory_space<vmem>>, vector<8x128xf32>
    tpu.vector_store %arg9[%c0_41, %c0_42], %63 {strides = array<i32>} : memref<72x128xf32, #tpu.memory_space<vmem>>, vector<8x128xf32>,
    %c8_i32_43 = arith.constant 8 : i32
    %65 = tpu.dynamic_rotate %58 by %c8_i32_43 dim 1 : vector<8x128xf32>, i32 -> vector<8x128xf32>
    %c1_44 = arith.constant 1 : index
    %c0_45 = arith.constant 0 : index
    %c0_46 = arith.constant 0 : index
    %66 = vector.load %arg2[%c1_44, %c0_45, %c0_46] : memref<9x1x128xf32, #tpu.memory_space<vmem>>, vector<1x1x128xf32>
    %67 = vector.shape_cast %66 : vector<1x1x128xf32> to vector<1x128xf32>
    %68 = vector.broadcast %67 : vector<1x128xf32> to vector<8x128xf32>
    %69 = arith.mulf %65, %68 : vector<8x128xf32>
    %c8_47 = arith.constant 8 : index
    %c0_48 = arith.constant 0 : index
    %70 = vector.load %arg9[%c8_47, %c0_48] : memref<72x128xf32, #tpu.memory_space<vmem>>, vector<8x128xf32>
    tpu.vector_store %arg9[%c8_47, %c0_48], %69 {strides = array<i32>} : memref<72x128xf32, #tpu.memory_space<vmem>>, vector<8x128xf32>,
    %c7_i32_49 = arith.constant 7 : i32
    %71 = tpu.dynamic_rotate %58 by %c7_i32_49 dim 1 : vector<8x128xf32>, i32 -> vector<8x128xf32>
    %c2_50 = arith.constant 2 : index
    %c0_51 = arith.constant 0 : index
    %c0_52 = arith.constant 0 : index
    %72 = vector.load %arg2[%c2_50, %c0_51, %c0_52] : memref<9x1x128xf32, #tpu.memory_space<vmem>>, vector<1x1x128xf32>
    %73 = vector.shape_cast %72 : vector<1x1x128xf32> to vector<1x128xf32>
    %74 = vector.broadcast %73 : vector<1x128xf32> to vector<8x128xf32>
    %75 = arith.mulf %71, %74 : vector<8x128xf32>
    %c16_53 = arith.constant 16 : index
    %c0_54 = arith.constant 0 : index
    %76 = vector.load %arg9[%c16_53, %c0_54] : memref<72x128xf32, #tpu.memory_space<vmem>>, vector<8x128xf32>
    tpu.vector_store %arg9[%c16_53, %c0_54], %75 {strides = array<i32>} : memref<72x128xf32, #tpu.memory_space<vmem>>, vector<8x128xf32>,
    %c1_i32_55 = arith.constant 1 : i32
    %77 = tpu.dynamic_rotate %58 by %c1_i32_55 dim 1 : vector<8x128xf32>, i32 -> vector<8x128xf32>
    %c3_56 = arith.constant 3 : index
    %c0_57 = arith.constant 0 : index
    %c0_58 = arith.constant 0 : index
    %78 = vector.load %arg2[%c3_56, %c0_57, %c0_58] : memref<9x1x128xf32, #tpu.memory_space<vmem>>, vector<1x1x128xf32>
    %79 = vector.shape_cast %78 : vector<1x1x128xf32> to vector<1x128xf32>
    %80 = vector.broadcast %79 : vector<1x128xf32> to vector<8x128xf32>
    %81 = arith.mulf %77, %80 : vector<8x128xf32>
    %c24_59 = arith.constant 24 : index
    %c0_60 = arith.constant 0 : index
    %82 = vector.load %arg9[%c24_59, %c0_60] : memref<72x128xf32, #tpu.memory_space<vmem>>, vector<8x128xf32>
    tpu.vector_store %arg9[%c24_59, %c0_60], %81 {strides = array<i32>} : memref<72x128xf32, #tpu.memory_space<vmem>>, vector<8x128xf32>,
    %c32_61 = arith.constant 32 : index
    %c0_62 = arith.constant 0 : index
    %83 = vector.load %arg9[%c32_61, %c0_62] : memref<72x128xf32, #tpu.memory_space<vmem>>, vector<8x128xf32>
    tpu.vector_store %arg9[%c32_61, %c0_62], %58 {strides = array<i32>} : memref<72x128xf32, #tpu.memory_space<vmem>>, vector<8x128xf32>,
    %c127_i32_63 = arith.constant 127 : i32
    %84 = tpu.dynamic_rotate %58 by %c127_i32_63 dim 1 : vector<8x128xf32>, i32 -> vector<8x128xf32>
    %c5_64 = arith.constant 5 : index
    %c0_65 = arith.constant 0 : index
    %c0_66 = arith.constant 0 : index
    %85 = vector.load %arg2[%c5_64, %c0_65, %c0_66] : memref<9x1x128xf32, #tpu.memory_space<vmem>>, vector<1x1x128xf32>
    %86 = vector.shape_cast %85 : vector<1x1x128xf32> to vector<1x128xf32>
    %87 = vector.broadcast %86 : vector<1x128xf32> to vector<8x128xf32>
    %88 = arith.mulf %84, %87 : vector<8x128xf32>
    %c40 = arith.constant 40 : index
    %c0_67 = arith.constant 0 : index
    %89 = vector.load %arg9[%c40, %c0_67] : memref<72x128xf32, #tpu.memory_space<vmem>>, vector<8x128xf32>
    tpu.vector_store %arg9[%c40, %c0_67], %88 {strides = array<i32>} : memref<72x128xf32, #tpu.memory_space<vmem>>, vector<8x128xf32>,
    %c121_i32_68 = arith.constant 121 : i32
    %90 = tpu.dynamic_rotate %58 by %c121_i32_68 dim 1 : vector<8x128xf32>, i32 -> vector<8x128xf32>
    %c6_69 = arith.constant 6 : index
    %c0_70 = arith.constant 0 : index
    %c0_71 = arith.constant 0 : index
    %91 = vector.load %arg2[%c6_69, %c0_70, %c0_71] : memref<9x1x128xf32, #tpu.memory_space<vmem>>, vector<1x1x128xf32>
    %92 = vector.shape_cast %91 : vector<1x1x128xf32> to vector<1x128xf32>
    %93 = vector.broadcast %92 : vector<1x128xf32> to vector<8x128xf32>
    %94 = arith.mulf %90, %93 : vector<8x128xf32>
    %c48 = arith.constant 48 : index
    %c0_72 = arith.constant 0 : index
    %95 = vector.load %arg9[%c48, %c0_72] : memref<72x128xf32, #tpu.memory_space<vmem>>, vector<8x128xf32>
    tpu.vector_store %arg9[%c48, %c0_72], %94 {strides = array<i32>} : memref<72x128xf32, #tpu.memory_space<vmem>>, vector<8x128xf32>,
    %c120_i32_73 = arith.constant 120 : i32
    %96 = tpu.dynamic_rotate %58 by %c120_i32_73 dim 1 : vector<8x128xf32>, i32 -> vector<8x128xf32>
    %c7_74 = arith.constant 7 : index
    %c0_75 = arith.constant 0 : index
    %c0_76 = arith.constant 0 : index
    %97 = vector.load %arg2[%c7_74, %c0_75, %c0_76] : memref<9x1x128xf32, #tpu.memory_space<vmem>>, vector<1x1x128xf32>
    %98 = vector.shape_cast %97 : vector<1x1x128xf32> to vector<1x128xf32>
    %99 = vector.broadcast %98 : vector<1x128xf32> to vector<8x128xf32>
    %100 = arith.mulf %96, %99 : vector<8x128xf32>
    %c56 = arith.constant 56 : index
    %c0_77 = arith.constant 0 : index
    %101 = vector.load %arg9[%c56, %c0_77] : memref<72x128xf32, #tpu.memory_space<vmem>>, vector<8x128xf32>
    tpu.vector_store %arg9[%c56, %c0_77], %100 {strides = array<i32>} : memref<72x128xf32, #tpu.memory_space<vmem>>, vector<8x128xf32>,
    %c119_i32_78 = arith.constant 119 : i32
    %102 = tpu.dynamic_rotate %58 by %c119_i32_78 dim 1 : vector<8x128xf32>, i32 -> vector<8x128xf32>
    %c8_79 = arith.constant 8 : index
    %c0_80 = arith.constant 0 : index
    %c0_81 = arith.constant 0 : index
    %103 = vector.load %arg2[%c8_79, %c0_80, %c0_81] : memref<9x1x128xf32, #tpu.memory_space<vmem>>, vector<1x1x128xf32>
    %104 = vector.shape_cast %103 : vector<1x1x128xf32> to vector<1x128xf32>
    %105 = vector.broadcast %104 : vector<1x128xf32> to vector<8x128xf32>
    %106 = arith.mulf %102, %105 : vector<8x128xf32>
    %c64 = arith.constant 64 : index
    %c0_82 = arith.constant 0 : index
    %107 = vector.load %arg9[%c64, %c0_82] : memref<72x128xf32, #tpu.memory_space<vmem>>, vector<8x128xf32>
    tpu.vector_store %arg9[%c64, %c0_82], %106 {strides = array<i32>} : memref<72x128xf32, #tpu.memory_space<vmem>>, vector<8x128xf32>,
    %c0_83 = arith.constant 0 : index
    %c0_84 = arith.constant 0 : index
    %108 = vector.load %arg4[%c0_83, %c0_84] : memref<8x72xf32, #tpu.memory_space<vmem>>, vector<8x72xf32>
    %c0_85 = arith.constant 0 : index
    %c0_86 = arith.constant 0 : index
    %109 = vector.load %arg9[%c0_85, %c0_86] : memref<72x128xf32, #tpu.memory_space<vmem>>, vector<72x128xf32>
    %cst_87 = arith.constant dense<0.000000e+00> : vector<8x128xf32>
    %110 = tpu.matmul %108, %109, %cst_87 {dimension_numbers = #tpu.dot_dimension_numbers<[1], [0], [0], [1], [0, 0, 1, 1], [], []>} : vector<8x72xf32>, vector<72x128xf32>, vector<8x128xf32> -> vector<8x128xf32>
    %c0_88 = arith.constant 0 : index
    %c0_89 = arith.constant 0 : index
    %111 = vector.load %arg6[%c0_88, %c0_89] : memref<8x1xf32, #tpu.memory_space<vmem>>, vector<8x1xf32>
    %112 = vector.broadcast %111 : vector<8x1xf32> to vector<8x128xf32>
    %113 = arith.addf %110, %112 : vector<8x128xf32>
    %cst_90 = arith.constant 0.000000e+00 : f32
    %114 = vector.broadcast %cst_90 : f32 to vector<8x128xf32>
    %115 = arith.maximumf %113, %114 : vector<8x128xf32>
    %c0_91 = arith.constant 0 : index
    %c0_92 = arith.constant 0 : index
    %c0_93 = arith.constant 0 : index
    %116 = vector.load %arg7[%c0_91, %c0_92, %c0_93] : memref<1x8x128xf32, #tpu.memory_space<vmem>>, vector<1x8x128xf32>
    %117 = vector.shape_cast %116 : vector<1x8x128xf32> to vector<8x128xf32>
    %118 = vector.shape_cast %115 : vector<8x128xf32> to vector<1x8x128xf32>
    tpu.vector_store %arg7[%c0_91, %c0_92, %c0_93], %118 {strides = array<i32>} : memref<1x8x128xf32, #tpu.memory_space<vmem>>, vector<1x8x128xf32>,
    return
  }
  func.func @transform_0(%arg0: i32) -> (i32, i32, i32) {
    %c0_i32 = arith.constant 0 : i32
    %c0_i32_0 = arith.constant 0 : i32
    %c0_i32_1 = arith.constant 0 : i32
    return %arg0, %c0_i32, %c0_i32_0 : i32, i32, i32
  }
  func.func @transform_1(%arg0: i32) -> (i32, i32, i32) {
    %c0_i32 = arith.constant 0 : i32
    %c0_i32_0 = arith.constant 0 : i32
    %c0_i32_1 = arith.constant 0 : i32
    %c0_i32_2 = arith.constant 0 : i32
    return %c0_i32, %c0_i32_0, %c0_i32_1 : i32, i32, i32
  }
  func.func @transform_2(%arg0: i32) -> (i32, i32) {
    %c0_i32 = arith.constant 0 : i32
    %c0_i32_0 = arith.constant 0 : i32
    %c0_i32_1 = arith.constant 0 : i32
    return %c0_i32, %c0_i32_0 : i32, i32
  }
  func.func @transform_3(%arg0: i32) -> (i32, i32) {
    %c0_i32 = arith.constant 0 : i32
    %c0_i32_0 = arith.constant 0 : i32
    %c0_i32_1 = arith.constant 0 : i32
    return %c0_i32, %c0_i32_0 : i32, i32
  }
  func.func @transform_4(%arg0: i32) -> (i32, i32) {
    %c0_i32 = arith.constant 0 : i32
    %c0_i32_0 = arith.constant 0 : i32
    %c0_i32_1 = arith.constant 0 : i32
    return %c0_i32, %c0_i32_0 : i32, i32
  }
  func.func @transform_5(%arg0: i32) -> (i32, i32) {
    %c0_i32 = arith.constant 0 : i32
    %c0_i32_0 = arith.constant 0 : i32
    %c0_i32_1 = arith.constant 0 : i32
    return %c0_i32, %c0_i32_0 : i32, i32
  }
  func.func @transform_6(%arg0: i32) -> (i32, i32, i32) {
    %c0_i32 = arith.constant 0 : i32
    %c0_i32_0 = arith.constant 0 : i32
    %c0_i32_1 = arith.constant 0 : i32
    return %arg0, %c0_i32, %c0_i32_0 : i32, i32, i32
  }
}

</mosaic_0001>

<llo_original>
// kernel: down_forward.1
$region0: #{down_forward.1}
  #allocation0 [shape = 'u32[]', space=smem, size = 0x4, offset = 0x4, fixed_abs, tag = 'smem constant byte address 0x4 - core index']
  #allocation1 [shape = 'u32[144,128]{1,0:T(1,128)}', space=vmem, size = 0x12000, scoped, tag = 'internal scratch']
  #allocation2 [shape = 'f32[36,128]{1,0:T(8,128)}', space=vmem, size = 0x5000, scoped, tag = 'scratch operand']
  #allocation3 [shape = 'f32[72,128]{1,0:T(8,128)}', space=vmem, size = 0x9000, scoped, tag = 'scratch operand']
  %s0 = inlined_call_operand.vmem [shape: f32[2,4,128], index: 0, kind: input, shape index: {}]
  %s1 = inlined_call_operand.vmem [shape: f32[9,1,128], index: 1, kind: input, shape index: {}]
  %s2 = inlined_call_operand.vmem [shape: f32[8,36], index: 2, kind: input, shape index: {}]
  %s3 = inlined_call_operand.vmem [shape: f32[8,72], index: 3, kind: input, shape index: {}]
  %s4 = inlined_call_operand.vmem [shape: f32[8,1], index: 4, kind: input, shape index: {}]
  %s5 = inlined_call_operand.vmem [shape: f32[8,1], index: 5, kind: input, shape index: {}]
  %s6 = inlined_call_operand.vmem [shape: f32[2,8,128], index: 6, kind: output, shape index: {}]
  %s7 = sld [smem:[#allocation0]]
  $region57: #{down_forward.1} parent=0
    _
  %s9 = ssub.s32 1, %s7
  %s10 = scalar_select 0, %s9, %s7
  loop: start=0, step=1, limit=4
  $region2: #{down_forward.1} parent=0 // loop_pre_header
    _
  $region3: #{down_forward.1} parent=0 // loop_header
    %s12 = sphi 0, %s16
    %p13 = scmp.ge.s32.totalorder %s12, 4
    %s22 = sphi 0, %s24
    %s25 = sphi 0, %s22
    %s26 = sphi 0, %s25
    %s42 = sphi 0, %s26
    %s46 = sphi 0, %s46
    %s48 = sphi 0, %s46
    %s49 = sphi 0, %s48
    %s63 = sphi 0, %s49
    %s67 = sphi 0, %s67
    %s69 = sphi 0, %s67
    %s70 = sphi 0, %s69
    %s84 = sphi 0, %s70
    %s88 = sphi 0, %s88
    %s90 = sphi 0, %s88
    %s91 = sphi 0, %s90
    %s105 = sphi 0, %s91
    %s109 = sphi 0, %s109
    %s111 = sphi 0, %s109
    %s112 = sphi 0, %s111
    %s126 = sphi 0, %s112
    %s130 = sphi 0, %s130
    %s132 = sphi 0, %s130
    %s133 = sphi 0, %s132
    %s147 = sphi 0, %s133
    %s153 = sphi 0, %s155
    %s156 = sphi 0, %s153
    %s157 = sphi 0, %s156
    %s173 = sphi 0, %s157
  $region4: #{down_forward.1} parent=0 // loop_header_branch
    %15 = sbr.rel (%p13) target = $region8
  $region5: #{down_forward.1} parent=0 // loop_body
    %s17 = ssub.s32 %s12, 1
    %s18 = ssub.s32 %s12, 2
    %s19 = sadd.s32 %s12, 1
    %s20 = ssub.s32 %s12, %s19
    %p21 = scmp.eq.s32.totalorder %s20, 0
    %s23 = sadd.s32 %s22, 1
    %s24 = scalar_select %p21, %s22, %s23
    %p27 = pneg %p21
    %p28 = scmp.eq.s32.totalorder %s12, 1
    %p29 = por %p27, %p28
    %p30 = scmp.ne.s32.totalorder %s22, %s25
    %p31 = scmp.eq.s32.totalorder %s12, 0
    %p32 = por %p30, %p31
    %p33 = scmp.ne.s32.totalorder %s22, %s25
    %p34 = scmp.eq.s32.totalorder %s17, 1
    %p35 = por %p33, %p34
    %p36 = scmp.ne.s32.totalorder %s25, %s26
    %p37 = scmp.eq.s32.totalorder %s17, 0
    %p38 = por %p36, %p37
    %p39 = scmp.ne.s32.totalorder %s25, %s26
    %p40 = scmp.eq.s32.totalorder %s18, 1
    %p41 = por %p39, %p40
    %p43 = scmp.ne.s32.totalorder %s26, %s42
    %p44 = scmp.eq.s32.totalorder %s18, 0
    %p45 = por %p43, %p44
    %s47 = sadd.s32 %s46, 1
    %p50 = scmp.eq.s32.totalorder %s12, 1
    %p51 = scmp.ne.s32.totalorder %s46, %s48
    %p52 = scmp.eq.s32.totalorder %s12, 0
    %p53 = por %p51, %p52
    %p54 = scmp.ne.s32.totalorder %s46, %s48
    %p55 = scmp.eq.s32.totalorder %s17, 1
    %p56 = por %p54, %p55
    %p57 = scmp.ne.s32.totalorder %s48, %s49
    %p58 = scmp.eq.s32.totalorder %s17, 0
    %p59 = por %p57, %p58
    %p60 = scmp.ne.s32.totalorder %s48, %s49
    %p61 = scmp.eq.s32.totalorder %s18, 1
    %p62 = por %p60, %p61
    %p64 = scmp.ne.s32.totalorder %s49, %s63
    %p65 = scmp.eq.s32.totalorder %s18, 0
    %p66 = por %p64, %p65
    %s68 = sadd.s32 %s67, 1
    %p71 = scmp.eq.s32.totalorder %s12, 1
    %p72 = scmp.ne.s32.totalorder %s67, %s69
    %p73 = scmp.eq.s32.totalorder %s12, 0
    %p74 = por %p72, %p73
    %p75 = scmp.ne.s32.totalorder %s67, %s69
    %p76 = scmp.eq.s32.totalorder %s17, 1
    %p77 = por %p75, %p76
    %p78 = scmp.ne.s32.totalorder %s69, %s70
    %p79 = scmp.eq.s32.totalorder %s17, 0
    %p80 = por %p78, %p79
    %p81 = scmp.ne.s32.totalorder %s69, %s70
    %p82 = scmp.eq.s32.totalorder %s18, 1
    %p83 = por %p81, %p82
    %p85 = scmp.ne.s32.totalorder %s70, %s84
    %p86 = scmp.eq.s32.totalorder %s18, 0
    %p87 = por %p85, %p86
    %s89 = sadd.s32 %s88, 1
    %p92 = scmp.eq.s32.totalorder %s12, 1
    %p93 = scmp.ne.s32.totalorder %s88, %s90
    %p94 = scmp.eq.s32.totalorder %s12, 0
    %p95 = por %p93, %p94
    %p96 = scmp.ne.s32.totalorder %s88, %s90
    %p97 = scmp.eq.s32.totalorder %s17, 1
    %p98 = por %p96, %p97
    %p99 = scmp.ne.s32.totalorder %s90, %s91
    %p100 = scmp.eq.s32.totalorder %s17, 0
    %p101 = por %p99, %p100
    %p102 = scmp.ne.s32.totalorder %s90, %s91
    %p103 = scmp.eq.s32.totalorder %s18, 1
    %p104 = por %p102, %p103
    %p106 = scmp.ne.s32.totalorder %s91, %s105
    %p107 = scmp.eq.s32.totalorder %s18, 0
    %p108 = por %p106, %p107
    %s110 = sadd.s32 %s109, 1
    %p113 = scmp.eq.s32.totalorder %s12, 1
    %p114 = scmp.ne.s32.totalorder %s109, %s111
    %p115 = scmp.eq.s32.totalorder %s12, 0
    %p116 = por %p114, %p115
    %p117 = scmp.ne.s32.totalorder %s109, %s111
    %p118 = scmp.eq.s32.totalorder %s17, 1
    %p119 = por %p117, %p118
    %p120 = scmp.ne.s32.totalorder %s111, %s112
    %p121 = scmp.eq.s32.totalorder %s17, 0
    %p122 = por %p120, %p121
    %p123 = scmp.ne.s32.totalorder %s111, %s112
    %p124 = scmp.eq.s32.totalorder %s18, 1
    %p125 = por %p123, %p124
    %p127 = scmp.ne.s32.totalorder %s112, %s126
    %p128 = scmp.eq.s32.totalorder %s18, 0
    %p129 = por %p127, %p128
    %s131 = sadd.s32 %s130, 1
    %p134 = scmp.eq.s32.totalorder %s12, 1
    %p135 = scmp.ne.s32.totalorder %s130, %s132
    %p136 = scmp.eq.s32.totalorder %s12, 0
    %p137 = por %p135, %p136
    %p138 = scmp.ne.s32.totalorder %s130, %s132
    %p139 = scmp.eq.s32.totalorder %s17, 1
    %p140 = por %p138, %p139
    %p141 = scmp.ne.s32.totalorder %s132, %s133
    %p142 = scmp.eq.s32.totalorder %s17, 0
    %p143 = por %p141, %p142
    %p144 = scmp.ne.s32.totalorder %s132, %s133
    %p145 = scmp.eq.s32.totalorder %s18, 1
    %p146 = por %p144, %p145
    %p148 = scmp.ne.s32.totalorder %s133, %s147
    %p149 = scmp.eq.s32.totalorder %s18, 0
    %p150 = por %p148, %p149
    %s151 = ssub.s32 %s12, %s19
    %p152 = scmp.eq.s32.totalorder %s151, 0
    %s154 = sadd.s32 %s153, 1
    %s155 = scalar_select %p152, %s153, %s154
    %p158 = pneg %p152
    %p159 = scmp.eq.s32.totalorder %s12, 1
    %p160 = por %p158, %p159
    %p161 = scmp.ne.s32.totalorder %s153, %s156
    %p162 = scmp.eq.s32.totalorder %s12, 0
    %p163 = por %p161, %p162
    %p164 = scmp.ne.s32.totalorder %s153, %s156
    %p165 = scmp.eq.s32.totalorder %s17, 1
    %p166 = por %p164, %p165
    %p167 = scmp.ne.s32.totalorder %s156, %s157
    %p168 = scmp.eq.s32.totalorder %s17, 0
    %p169 = por %p167, %p168
    %p170 = scmp.ne.s32.totalorder %s156, %s157
    %p171 = scmp.eq.s32.totalorder %s18, 1
    %p172 = por %p170, %p171
    %p174 = scmp.ne.s32.totalorder %s157, %s173
    %p175 = scmp.eq.s32.totalorder %s18, 0
    %p176 = por %p174, %p175
    %p177 = scmp.le.s32.totalorder 1, %s12
    %p178 = scmp.lt.s32.totalorder %s12, 3
    %p179 = pnand %p177, %p178
    %p180 = pneg %p179
    // Predicated region
    $region9: #{down_forward.1} parent=5 // pred_check
      _
    $region10: #{down_forward.1} parent=5 // pred_check_branch
      %182 = sbr.rel (%p179) target = $region12
    $region11: #{down_forward.1} parent=5 // pred_region
      %s183 = ssub.s32 %s12, 1
      // Predicated region
      $region13: #{down_forward.1} parent=11 // pred_check
        %p184 = pneg %p59
      $region14: #{down_forward.1} parent=11 // pred_check_branch
        %186 = sbr.rel (%p184) target = $region16
      $region15: #{down_forward.1} parent=11 // pred_region
        _
      $region16: #{down_forward.1} parent=11 // pred_fallthru
        _
      // Predicated region
      $region17: #{down_forward.1} parent=11 // pred_check
        %p187 = pneg %p80
      $region18: #{down_forward.1} parent=11 // pred_check_branch
        %189 = sbr.rel (%p187) target = $region20
      $region19: #{down_forward.1} parent=11 // pred_region
        _
      $region20: #{down_forward.1} parent=11 // pred_fallthru
        _
      // Predicated region
      $region21: #{down_forward.1} parent=11 // pred_check
        %p190 = pneg %p101
      $region22: #{down_forward.1} parent=11 // pred_check_branch
        %192 = sbr.rel (%p190) target = $region24
      $region23: #{down_forward.1} parent=11 // pred_region
        _
      $region24: #{down_forward.1} parent=11 // pred_fallthru
        _
      // Predicated region
      $region25: #{down_forward.1} parent=11 // pred_check
        %p193 = pneg %p122
      $region26: #{down_forward.1} parent=11 // pred_check_branch
        %195 = sbr.rel (%p193) target = $region28
      $region27: #{down_forward.1} parent=11 // pred_region
        _
      $region28: #{down_forward.1} parent=11 // pred_fallthru
        _
      // Predicated region
      $region29: #{down_forward.1} parent=11 // pred_check
        %p196 = pneg %p143
      $region30: #{down_forward.1} parent=11 // pred_check_branch
        %198 = sbr.rel (%p196) target = $region32
      $region31: #{down_forward.1} parent=11 // pred_region
        _
      $region32: #{down_forward.1} parent=11 // pred_fallthru
        _
    $region12: #{down_forward.1} parent=5 // pred_fallthru
      _
    %p199 = scmp.lt.s32.totalorder %s12, 2
    // Predicated region
    $region33: #{down_forward.1} parent=5 // pred_check
      %p200 = pneg %p199
    $region34: #{down_forward.1} parent=5 // pred_check_branch
      %202 = sbr.rel (%p200) target = $region36
    $region35: #{down_forward.1} parent=5 // pred_region
      // Predicated region
      $region37: #{down_forward.1} parent=35 // pred_check
        %p203 = pneg %p32
      $region38: #{down_forward.1} parent=35 // pred_check_branch
        %205 = sbr.rel (%p203) target = $region40
      $region39: #{down_forward.1} parent=35 // pred_region
        %p206 = scmp.lt.s32.totalorder %s12, 1
        %s207 = scalar_select %p206, %s12, 1
        %s208 = smul.addr %s207, 4
        %s209 = scalar_lea.vmem %s0, %s208
      $region40: #{down_forward.1} parent=35 // pred_fallthru
        _
    $region36: #{down_forward.1} parent=5 // pred_fallthru
      _
    %p210 = scmp.le.s32.totalorder 1, %s12
    %p211 = scmp.lt.s32.totalorder %s12, 3
    %p212 = pnand %p210, %p211
    %p213 = pneg %p212
    // Predicated region
    $region41: #{down_forward.1} parent=5 // pred_check
      _
    $region42: #{down_forward.1} parent=5 // pred_check_branch
      %215 = sbr.rel (%p212) target = $region44
    $region43: #{down_forward.1} parent=5 // pred_region
      %s216 = ssub.s32 %s12, 1
      %p217 = scmp.lt.s32.totalorder %s17, 1
      %s218 = scalar_select %p217, %s17, 1
      %s219 = smul.addr %s218, 4
      %s220 = scalar_lea.vmem %s0, %s219
      %p221 = pneg %p38
      %p222 = pneg %p35
      %p223 = pneg %p59
      %p224 = pneg %p56
      %p225 = pneg %p80
      %p226 = pneg %p77
      %p227 = pneg %p101
      %p228 = pneg %p98
      %p229 = pneg %p122
      %p230 = pneg %p119
      %p231 = pneg %p143
      %p232 = pneg %p140
      %p233 = pneg %p169
      %p234 = pneg %p166
      %p235 = scmp.lt.s32.totalorder %s17, 1
      %s236 = scalar_select %p235, %s17, 1
      %s237 = smul.addr %s236, 8
      %s238 = scalar_lea.vmem %s6, %s237
      %p239 = scmp.lt.s32.totalorder %s17, 1
      %s240 = scalar_select %p239, %s17, 1
      %s241 = smul.addr %s240, 4
      %s242 = scalar_lea.vmem %s0, %s241
      %p243 = scmp.lt.s32.totalorder %s17, 1
      %s244 = scalar_select %p243, %s17, 1
      %s245 = smul.addr %s244, 8
      %s246 = scalar_lea.vmem %s6, %s245
      %v247 = vld [vmem:[%s242] sm:$0xf]
      %248 = vrot.lane.b32.xlu0 %v247, 9
      %v249 = vpop.permute.xlu0 %248
      %v250 = vld [vmem:[%s1] sm:$0x1]
      %v252 = vlaneseq
      %v253 = vshrl.u32 %v252, 7
      %v254 = vsub.s32 0, %v253
      %v255 = vrot.slane %v250, %v254
      %v257 = vmul.f32 %v249, %v255
      %258 = vst [vmem:[#allocation2] sm:$0xf] %v257
      %259 = vrot.lane.b32.xlu0 %v247, 8
      %v260 = vpop.permute.xlu0 %259
      %s261 = scalar_lea.vmem %s1, 1
      %v262 = vld [vmem:[%s261] sm:$0x1]
      %v264 = vlaneseq
      %v265 = vshrl.u32 %v264, 7
      %v266 = vsub.s32 0, %v265
      %v267 = vrot.slane %v262, %v266
      %v269 = vmul.f32 %v260, %v267
      %270 = vst [vmem:[#allocation2 + $0x4] sm:$0xf] %v269
      %271 = vrot.lane.b32.xlu0 %v247, 7
      %v272 = vpop.permute.xlu0 %271
      %s273 = scalar_lea.vmem %s1, 2
      %v274 = vld [vmem:[%s273] sm:$0x1]
      %v276 = vlaneseq
      %v277 = vshrl.u32 %v276, 7
      %v278 = vsub.s32 0, %v277
      %v279 = vrot.slane %v274, %v278
      %v281 = vmul.f32 %v272, %v279
      %282 = vst [vmem:[#allocation2 + $0x8] sm:$0xf] %v281
      %283 = vrot.lane.b32.xlu0 %v247, 1
      %v284 = vpop.permute.xlu0 %283
      %s285 = scalar_lea.vmem %s1, 3
      %v286 = vld [vmem:[%s285] sm:$0x1]
      %v288 = vlaneseq
      %v289 = vshrl.u32 %v288, 7
      %v290 = vsub.s32 0, %v289
      %v291 = vrot.slane %v286, %v290
      %v293 = vmul.f32 %v284, %v291
      %294 = vst [vmem:[#allocation2 + $0xc] sm:$0xf] %v293
      %295 = vst [vmem:[#allocation2 + $0x10] sm:$0xf] %v247
      %296 = vrot.lane.b32.xlu0 %v247, 127
      %v297 = vpop.permute.xlu0 %296
      %s298 = scalar_lea.vmem %s1, 5
      %v299 = vld [vmem:[%s298] sm:$0x1]
      %v301 = vlaneseq
      %v302 = vshrl.u32 %v301, 7
      %v303 = vsub.s32 0, %v302
      %v304 = vrot.slane %v299, %v303
      %v306 = vmul.f32 %v297, %v304
      %307 = vst [vmem:[#allocation2 + $0x14] sm:$0xf] %v306
      %308 = vrot.lane.b32.xlu0 %v247, 121
      %v309 = vpop.permute.xlu0 %308
      %s310 = scalar_lea.vmem %s1, 6
      %v311 = vld [vmem:[%s310] sm:$0x1]
      %v313 = vlaneseq
      %v314 = vshrl.u32 %v313, 7
      %v315 = vsub.s32 0, %v314
      %v316 = vrot.slane %v311, %v315
      %v318 = vmul.f32 %v309, %v316
      %319 = vst [vmem:[#allocation2 + $0x18] sm:$0xf] %v318
      %320 = vrot.lane.b32.xlu0 %v247, 120
      %v321 = vpop.permute.xlu0 %320
      %s322 = scalar_lea.vmem %s1, 7
      %v323 = vld [vmem:[%s322] sm:$0x1]
      %v325 = vlaneseq
      %v326 = vshrl.u32 %v325, 7
      %v327 = vsub.s32 0, %v326
      %v328 = vrot.slane %v323, %v327
      %v330 = vmul.f32 %v321, %v328
      %331 = vst [vmem:[#allocation2 + $0x1c] sm:$0xf] %v330
      %332 = vrot.lane.b32.xlu0 %v247, 119
      %v333 = vpop.permute.xlu0 %332
      %s334 = scalar_lea.vmem %s1, 8
      %v335 = vld [vmem:[%s334] sm:$0x1]
      %v337 = vlaneseq
      %v338 = vshrl.u32 %v337, 7
      %v339 = vsub.s32 0, %v338
      %v340 = vrot.slane %v335, %v339
      %v342 = vmul.f32 %v333, %v340
      %343 = vst [vmem:[#allocation2 + $0x20] sm:$0xf] %v342
      %v344 = vld [vmem:[%s2] sm:$0xff]
      %v345 = vld [vmem:[#allocation2] sm:$0xff]
      %v346 = vld [vmem:[#allocation2 + $0x8] sm:$0xff]
      %v347 = vld [vmem:[#allocation2 + $0x10] sm:$0xff]
      %v348 = vld [vmem:[#allocation2 + $0x18] sm:$0xff]
      %v349 = vld [vmem:[#allocation2 + $0x20] sm:$0xf]
      %v350 = vld [vmem:[%s4] sm:$0xff]
      %352 = vset.pattern.permute.xlu0 0
      %353 = vperm.xlu0 %352, %v350
      %v354 = vpop.permute.xlu0 %353
      %vm356 = vcmask 293888
      %v358 = vsel %vm356, %v344, 0
      %vm360 = vcmask 1043456
      %v362 = vsel %vm360, %v349, 0
      %364 = vmatprep.subr.mxu0 0.0
      %365 = vmatpush1.msra.mxu0 %v345
      %366 = vmatprep.subr.mxu0 0.0
      %367 = vmatpush1.msra.mxu0 %v346
      %368 = vmatprep.subr.mxu0 0.0
      %369 = vmatpush1.msra.mxu0 %v347
      %370 = vmatprep.subr.mxu0 0.0
      %371 = vmatpush1.msra.mxu0 %v348
      %372 = vmatprep.subr.mxu0 0.0
      %373 = vmatpush1.msra.mxu0 %v362
      %374 = vmatprep.subr.mxu0 0.0
      %375 = vmatpush1.msra.mxu0 0.0
      %376 = vmatprep.subr.mxu0 0.0
      %377 = vmatpush1.msra.mxu0 0.0
      %378 = vmatprep.subr.mxu0 0.0
      %379 = vmatpush1.msra.mxu0 0.0
      %380 = vmatprep.subr.mxu0 0.0
      %381 = vmatpush1.msra.mxu0 0.0
      %382 = vmatprep.subr.mxu0 0.0
      %383 = vmatpush1.msra.mxu0 0.0
      %384 = vmatprep.subr.mxu0 0.0
      %385 = vmatpush1.msra.mxu0 0.0
      %386 = vmatprep.subr.mxu0 0.0
      %387 = vmatpush1.msra.mxu0 0.0
      %388 = vmatprep.subr.mxu0 0.0
      %389 = vmatpush1.msra.mxu0 0.0
      %390 = vmatprep.subr.mxu0 0.0
      %391 = vmatpush1.msra.mxu0 0.0
      %392 = vmatprep.subr.mxu0 0.0
      %393 = vmatpush1.msra.mxu0 0.0
      %394 = vmatprep.subr.mxu0 0.0
      %395 = vmatpush1.msra.mxu0 0.0
      %396 = vmatprep.subr.mxu0 0.0
      %397 = vmatpush1.msra.mxu0 0.0
      %398 = vmatprep.subr.mxu0 0.0
      %399 = vmatpush1.msra.mxu0 0.0
      %400 = vmatprep.subr.mxu0 0.0
      %401 = vmatpush1.msra.mxu0 0.0
      %402 = vmatprep.subr.mxu0 0.0
      %403 = vmatpush1.msra.mxu0 0.0
      %404 = vmatprep.subr.mxu0 0.0
      %405 = vmatpush1.msra.mxu0 0.0
      %406 = vmatprep.subr.mxu0 0.0
      %407 = vmatpush1.msra.mxu0 0.0
      %408 = vmatprep.subr.mxu0 0.0
      %409 = vmatpush1.msra.mxu0 0.0
      %410 = vmatprep.subr.mxu0 0.0
      %411 = vmatpush1.msra.mxu0 0.0
      %412 = vmatprep.subr.mxu0 0.0
      %413 = vmatpush1.msra.mxu0 0.0
      %414 = vmatprep.subr.mxu0 0.0
      %415 = vmatpush1.msra.mxu0 0.0
      %416 = vmatprep.subr.mxu0 0.0
      %417 = vmatpush1.msra.mxu0 0.0
      %418 = vmatprep.subr.mxu0 0.0
      %419 = vmatpush1.msra.mxu0 0.0
      %420 = vmatprep.subr.mxu0 0.0
      %421 = vmatpush1.msra.mxu0 0.0
      %422 = vmatprep.subr.mxu0 0.0
      %423 = vmatpush1.msra.mxu0 0.0
      %424 = vmatprep.subr.mxu0 0.0
      %425 = vmatpush1.msra.mxu0 0.0
      %426 = vmatprep.subr.mxu0 0.0
      %427 = vmatpush1.msra.mxu0 0.0
      %428 = vmatprep.mubr.f32.mxu0 0.0
      %429 = vmatmul.mubr.f32.gmra.mrb[0].mxu0 %v358
      %v430 = vpop.f32.mrb[0].mxu0
      %v431 = vadd.f32 %v354, %v430
      %v432 = vpop.f32.mrb[0].mxu0
      %433 = vdwg.mxu0
      %v434 = vmax.f32 %v431, 0.0
      %435 = vrot.lane.b32.xlu0 %v434, 9
      %v436 = vpop.permute.xlu0 %435
      %v437 = vld [vmem:[%s1] sm:$0x1]
      %v439 = vlaneseq
      %v440 = vshrl.u32 %v439, 7
      %v441 = vsub.s32 0, %v440
      %v442 = vrot.slane %v437, %v441
      %v444 = vmul.f32 %v436, %v442
      %445 = vst [vmem:[#allocation3] sm:$0xff] %v444
      %446 = vrot.lane.b32.xlu0 %v434, 8
      %v447 = vpop.permute.xlu0 %446
      %v448 = vld [vmem:[%s261] sm:$0x1]
      %v450 = vlaneseq
      %v451 = vshrl.u32 %v450, 7
      %v452 = vsub.s32 0, %v451
      %v453 = vrot.slane %v448, %v452
      %v455 = vmul.f32 %v447, %v453
      %456 = vst [vmem:[#allocation3 + $0x8] sm:$0xff] %v455
      %457 = vrot.lane.b32.xlu0 %v434, 7
      %v458 = vpop.permute.xlu0 %457
      %v459 = vld [vmem:[%s273] sm:$0x1]
      %v461 = vlaneseq
      %v462 = vshrl.u32 %v461, 7
      %v463 = vsub.s32 0, %v462
      %v464 = vrot.slane %v459, %v463
      %v466 = vmul.f32 %v458, %v464
      %467 = vst [vmem:[#allocation3 + $0x10] sm:$0xff] %v466
      %468 = vrot.lane.b32.xlu0 %v434, 1
      %v469 = vpop.permute.xlu0 %468
      %v470 = vld [vmem:[%s285] sm:$0x1]
      %v472 = vlaneseq
      %v473 = vshrl.u32 %v472, 7
      %v474 = vsub.s32 0, %v473
      %v475 = vrot.slane %v470, %v474
      %v477 = vmul.f32 %v469, %v475
      %478 = vst [vmem:[#allocation3 + $0x18] sm:$0xff] %v477
      %479 = vst [vmem:[#allocation3 + $0x20] sm:$0xff] %v434
      %480 = vrot.lane.b32.xlu0 %v434, 127
      %v481 = vpop.permute.xlu0 %480
      %v482 = vld [vmem:[%s298] sm:$0x1]
      %v484 = vlaneseq
      %v485 = vshrl.u32 %v484, 7
      %v486 = vsub.s32 0, %v485
      %v487 = vrot.slane %v482, %v486
      %v489 = vmul.f32 %v481, %v487
      %490 = vst [vmem:[#allocation3 + $0x28] sm:$0xff] %v489
      %491 = vrot.lane.b32.xlu0 %v434, 121
      %v492 = vpop.permute.xlu0 %491
      %v493 = vld [vmem:[%s310] sm:$0x1]
      %v495 = vlaneseq
      %v496 = vshrl.u32 %v495, 7
      %v497 = vsub.s32 0, %v496
      %v498 = vrot.slane %v493, %v497
      %v500 = vmul.f32 %v492, %v498
      %501 = vst [vmem:[#allocation3 + $0x30] sm:$0xff] %v500
      %502 = vrot.lane.b32.xlu0 %v434, 120
      %v503 = vpop.permute.xlu0 %502
      %v504 = vld [vmem:[%s322] sm:$0x1]
      %v506 = vlaneseq
      %v507 = vshrl.u32 %v506, 7
      %v508 = vsub.s32 0, %v507
      %v509 = vrot.slane %v504, %v508
      %v511 = vmul.f32 %v503, %v509
      %512 = vst [vmem:[#allocation3 + $0x38] sm:$0xff] %v511
      %513 = vrot.lane.b32.xlu0 %v434, 119
      %v514 = vpop.permute.xlu0 %513
      %v515 = vld [vmem:[%s334] sm:$0x1]
      %v517 = vlaneseq
      %v518 = vshrl.u32 %v517, 7
      %v519 = vsub.s32 0, %v518
      %v520 = vrot.slane %v515, %v519
      %v522 = vmul.f32 %v514, %v520
      %523 = vst [vmem:[#allocation3 + $0x40] sm:$0xff] %v522
      %v524 = vld [vmem:[%s3] sm:$0xff]
      %v525 = vld [vmem:[#allocation3] sm:$0xff]
      %v526 = vld [vmem:[#allocation3 + $0x8] sm:$0xff]
      %v527 = vld [vmem:[#allocation3 + $0x10] sm:$0xff]
      %v528 = vld [vmem:[#allocation3 + $0x18] sm:$0xff]
      %v529 = vld [vmem:[#allocation3 + $0x20] sm:$0xff]
      %v530 = vld [vmem:[#allocation3 + $0x28] sm:$0xff]
      %v531 = vld [vmem:[#allocation3 + $0x30] sm:$0xff]
      %v532 = vld [vmem:[#allocation3 + $0x38] sm:$0xff]
      %v533 = vld [vmem:[#allocation3 + $0x40] sm:$0xff]
      %v534 = vld [vmem:[%s5] sm:$0xff]
      %536 = vset.pattern.permute.xlu0 0
      %537 = vperm.xlu0 %536, %v534
      %v538 = vpop.permute.xlu0 %537
      %vm540 = vcmask 588800
      %v542 = vsel %vm540, %v524, 0
      %544 = vmatprep.subr.mxu0 0.0
      %545 = vmatpush1.msra.mxu0 %v525
      %546 = vmatprep.subr.mxu0 0.0
      %547 = vmatpush1.msra.mxu0 %v526
      %548 = vmatprep.subr.mxu0 0.0
      %549 = vmatpush1.msra.mxu0 %v527
      %550 = vmatprep.subr.mxu0 0.0
      %551 = vmatpush1.msra.mxu0 %v528
      %552 = vmatprep.subr.mxu0 0.0
      %553 = vmatpush1.msra.mxu0 %v529
      %554 = vmatprep.subr.mxu0 0.0
      %555 = vmatpush1.msra.mxu0 %v530
      %556 = vmatprep.subr.mxu0 0.0
      %557 = vmatpush1.msra.mxu0 %v531
      %558 = vmatprep.subr.mxu0 0.0
      %559 = vmatpush1.msra.mxu0 %v532
      %560 = vmatprep.subr.mxu0 0.0
      %561 = vmatpush1.msra.mxu0 %v533
      %562 = vmatprep.subr.mxu0 0.0
      %563 = vmatpush1.msra.mxu0 0.0
      %564 = vmatprep.subr.mxu0 0.0
      %565 = vmatpush1.msra.mxu0 0.0
      %566 = vmatprep.subr.mxu0 0.0
      %567 = vmatpush1.msra.mxu0 0.0
      %568 = vmatprep.subr.mxu0 0.0
      %569 = vmatpush1.msra.mxu0 0.0
      %570 = vmatprep.subr.mxu0 0.0
      %571 = vmatpush1.msra.mxu0 0.0
      %572 = vmatprep.subr.mxu0 0.0
      %573 = vmatpush1.msra.mxu0 0.0
      %574 = vmatprep.subr.mxu0 0.0
      %575 = vmatpush1.msra.mxu0 0.0
      %576 = vmatprep.subr.mxu0 0.0
      %577 = vmatpush1.msra.mxu0 0.0
      %578 = vmatprep.subr.mxu0 0.0
      %579 = vmatpush1.msra.mxu0 0.0
      %580 = vmatprep.subr.mxu0 0.0
      %581 = vmatpush1.msra.mxu0 0.0
      %582 = vmatprep.subr.mxu0 0.0
      %583 = vmatpush1.msra.mxu0 0.0
      %584 = vmatprep.subr.mxu0 0.0
      %585 = vmatpush1.msra.mxu0 0.0
      %586 = vmatprep.subr.mxu0 0.0
      %587 = vmatpush1.msra.mxu0 0.0
      %588 = vmatprep.subr.mxu0 0.0
      %589 = vmatpush1.msra.mxu0 0.0
      %590 = vmatprep.subr.mxu0 0.0
      %591 = vmatpush1.msra.mxu0 0.0
      %592 = vmatprep.subr.mxu0 0.0
      %593 = vmatpush1.msra.mxu0 0.0
      %594 = vmatprep.subr.mxu0 0.0
      %595 = vmatpush1.msra.mxu0 0.0
      %596 = vmatprep.subr.mxu0 0.0
      %597 = vmatpush1.msra.mxu0 0.0
      %598 = vmatprep.subr.mxu0 0.0
      %599 = vmatpush1.msra.mxu0 0.0
      %600 = vmatprep.subr.mxu0 0.0
      %601 = vmatpush1.msra.mxu0 0.0
      %602 = vmatprep.subr.mxu0 0.0
      %603 = vmatpush1.msra.mxu0 0.0
      %604 = vmatprep.subr.mxu0 0.0
      %605 = vmatpush1.msra.mxu0 0.0
      %606 = vmatprep.subr.mxu0 0.0
      %607 = vmatpush1.msra.mxu0 0.0
      %608 = vmatprep.mubr.f32.mxu0 0.0
      %609 = vmatmul.mubr.f32.gmra.mrb[0].mxu0 %v542
      %v610 = vpop.f32.mrb[0].mxu0
      %v611 = vadd.f32 %v538, %v610
      %v612 = vpop.f32.mrb[0].mxu0
      %613 = vdwg.mxu0
      %v614 = vmax.f32 %v611, 0.0
      %615 = vst [vmem:[%s246] sm:$0xff] %v614
      %p616 = scmp.lt.s32.totalorder %s17, 1
      %s617 = scalar_select %p616, %s17, 1
      %s618 = smul.addr %s617, 8
      %s619 = scalar_lea.vmem %s6, %s618
      // Predicated region
      $region45: #{down_forward.1} parent=43 // pred_check
        %p620 = pneg %p166
      $region46: #{down_forward.1} parent=43 // pred_check_branch
        %622 = sbr.rel (%p620) target = $region48
      $region47: #{down_forward.1} parent=43 // pred_region
        _
      $region48: #{down_forward.1} parent=43 // pred_fallthru
        _
    $region44: #{down_forward.1} parent=5 // pred_fallthru
      _
    %p623 = scmp.le.s32.totalorder 2, %s12
    // Predicated region
    $region49: #{down_forward.1} parent=5 // pred_check
      %p624 = pneg %p623
    $region50: #{down_forward.1} parent=5 // pred_check_branch
      %626 = sbr.rel (%p624) target = $region52
    $region51: #{down_forward.1} parent=5 // pred_region
      %s627 = ssub.s32 %s12, 2
      // Predicated region
      $region53: #{down_forward.1} parent=51 // pred_check
        %p628 = pneg %p172
      $region54: #{down_forward.1} parent=51 // pred_check_branch
        %630 = sbr.rel (%p628) target = $region56
      $region55: #{down_forward.1} parent=51 // pred_region
        %p631 = scmp.lt.s32.totalorder %s18, 1
        %s632 = scalar_select %p631, %s18, 1
        %s633 = smul.addr %s632, 8
        %s634 = scalar_lea.vmem %s6, %s633
      $region56: #{down_forward.1} parent=51 // pred_fallthru
        _
    $region52: #{down_forward.1} parent=5 // pred_fallthru
      _
  $region6: #{down_forward.1} parent=0 // loop_footer
    %s16 = sadd.s32 1, %s12
  $region7: #{down_forward.1} parent=0 // loop_footer_branch
    %11 = sbr.rel target = $region3
  $region8: #{down_forward.1} parent=0 // loop_exit
    _

</llo_original>
